<compile_context>
chip_gen: v7x
topology: tpu7x:2x2x1
jax: 0.10.0
libtpu: 0.0.40
codegen_flags: <defaults>
</compile_context>

<pallas_src>
import jax
import jax.numpy as jnp
from jax import lax
from jax.experimental import pallas as pl
from jax.experimental.pallas import tpu as pltpu

_NEG = -1e30  # additive mask / padded-logit value


def _round_up(x, m):
    return -(-x // m) * m


# ----------------------------- Pallas kernel ------------------------------

def _make_kernel(filter_sizes, n_filters, fused_gather):
    """Kernel closure over the static filter configuration."""
    filter_sizes = tuple(int(f) for f in filter_sizes)
    F = int(n_filters)
    total_F = len(filter_sizes) * F
    fs_max = max(filter_sizes)
    fs_min = min(filter_sizes)

    def kernel(x_ref, w_ref, cb_ref, hw_ref, hb_ref, out_ref):
        # ---- LHS rows [Bt*S, K] for the single fused conv matmul ----------
        if fused_gather:
            Bt, S, _ = x_ref.shape
            Vp = w_ref.shape[0]
            ids = x_ref[...]                                        # [Bt,S,1] int32
            onehot = (ids == lax.broadcasted_iota(jnp.int32, (Bt, S, Vp), 2))
            lhs = onehot.astype(w_ref.dtype).reshape(Bt * S, Vp)    # one-hot lookup
        else:
            Bt, S, E = x_ref.shape
            lhs = x_ref[...].reshape(Bt * S, E)

        C = w_ref.shape[1]                                          # fs_max * total_F
        y = jnp.dot(lhs, w_ref[...], preferred_element_type=jnp.float32)
        y3 = y.reshape(Bt, S, C)                                    # [Bt, S, C] f32

        # ---- shift-add over offset-major slabs + max-over-time pooling ----
        T = S - fs_max + 1
        acc = y3[:, 0:T, 0:total_F]
        for i in range(1, fs_max):                                  # fs_max-1 slab adds
            acc = acc + y3[:, i:i + T, i * total_F:(i + 1) * total_F]
        pooled = jnp.max(acc, axis=1)                               # [Bt, total_F]

        # Exact tail positions for filters shorter than fs_max (few rows).
        if fs_min < fs_max:
            col = lax.broadcasted_iota(jnp.int32, (1, total_F), 1)
            fs_of_col = jnp.zeros((1, total_F), jnp.int32)
            for k, fs in enumerate(filter_sizes):
                in_k = (col >= k * F) & (col < (k + 1) * F)
                fs_of_col = jnp.where(in_k, fs, fs_of_col)
            for t in range(T, S - fs_min + 1):
                row = y3[:, t, 0:total_F]
                for i in range(1, min(fs_max, S - t)):
                    row = row + y3[:, t + i, i * total_F:(i + 1) * total_F]
                valid = fs_of_col <= (S - t)                        # [1, total_F]
                row = jnp.where(valid, row, _NEG)
                pooled = jnp.maximum(pooled, row)

        # bias + ReLU after pooling (ReLU monotone, bias constant over time:
        #   max_t relu(s_t + b) == relu(max_t s_t + b))
        cat = jnp.maximum(pooled + cb_ref[...], 0.0)                # [Bt, total_F] f32

        # ---- fused heads [fc | fc_rej], lane-padded to 128 columns --------
        logits = jnp.dot(cat.astype(hw_ref.dtype), hw_ref[...],
                         preferred_element_type=jnp.float32) + hb_ref[...]

        # ---- softmax over dim=1 (padded columns carry -1e30 -> exp == 0) --
        m = jnp.max(logits, axis=1, keepdims=True)
        e = jnp.exp(logits - m)
        out_ref[...] = e * pl.reciprocal(jnp.sum(e, axis=1, keepdims=True),
                                         approx=True)

    return kernel


# ------------------------------- wrapper -----------------------------------

def cnn_rej_forward(text, params, *, filter_sizes,
                    compute_dtype=jnp.bfloat16,
                    fuse_embedding_gather=None,
                    max_batch_tile=None,
                    min_grid_steps=4):
    """text: [B, S] int32 token ids.  Returns [B, output_dim + 1] float32."""
    emb_table = params["embedding"]                                 # [V, E] f32
    B, S = text.shape
    V, E = emb_table.shape
    F = params["conv_w"][0].shape[2]
    out_dim = params["fc_w"].shape[1]
    total_F = len(filter_sizes) * F
    fs_max = max(filter_sizes)
    C_all = fs_max * total_F
    assert S >= fs_max, "sequence shorter than the largest conv filter"

    # Fuse the embedding lookup in-kernel (one-hot MXU matmul against a
    # VMEM-resident table) only when the vocab is small enough that the extra
    # MXU contraction is cheaper than streaming [B,S,E] from HBM.
    if fuse_embedding_gather is None:
        fuse_embedding_gather = V <= 1024
    # TODO(synk): large-vocab in-kernel gather needs a DMA/dynamic-gather path
    # (Pallas TPU lax.gather lowering only supports same-shape take_along_axis),
    # so big vocabs fall back to an XLA gather of bf16 activations.

    # ---- pack conv weights OFFSET-major: slab i holds W_k[i] (0 if i>=fs_k) --
    w_slabs = []
    for i in range(fs_max):
        cols = []
        for k, fs in enumerate(filter_sizes):
            w = params["conv_w"][k]                                 # [fs, E, F]
            cols.append(w[i] if i < fs else jnp.zeros((E, F), w.dtype))
        w_slabs.append(jnp.concatenate(cols, axis=1))               # [E, total_F]
    w_pack = jnp.concatenate(w_slabs, axis=1)                       # [E, C_all] f32
    conv_bias = jnp.concatenate(params["conv_b"], axis=1).astype(jnp.float32)

    # ---- fused heads, lane-padded so the output store is lane-dense ---------
    out_w = out_dim + 1
    out_pad = _round_up(out_w, 128)
    head_w = jnp.concatenate([params["fc_w"], params["fc_rej_w"]], axis=1)
    head_w = jnp.pad(head_w, ((0, 0), (0, out_pad - out_w))).astype(compute_dtype)
    head_b = jnp.concatenate([params["fc_b"], params["fc_rej_b"]], axis=1)
    head_b = jnp.pad(head_b, ((0, 0), (0, out_pad - out_w)),
                     constant_values=_NEG).astype(jnp.float32)

    # ---- batch tiling: >= min_grid_steps grid steps (megacore + DMA overlap),
    #      tile bounded by a conservative VMEM working-set budget --------------
    if max_batch_tile is None:
        try:
            vmem_bytes = pltpu.get_tpu_info().vmem_capacity_bytes
        except Exception:
            vmem_bytes = 128 * 1024 * 1024
        in_row = (128 * 4 if fuse_embedding_gather
                  else _round_up(E, 128) * jnp.dtype(compute_dtype).itemsize)
        per_row = S * (2 * in_row                                   # double-buffered input
                       + _round_up(C_all, 128) * 4                  # y intermediate
                       + 2 * _round_up(total_F, 128) * 4)           # acc / temporaries
        budget = min(vmem_bytes // 4, 24 * 1024 * 1024)             # stay under scoped VMEM
        max_batch_tile = max(8, min(1024, (budget // per_row) // 8 * 8))
    Bt = min(max_batch_tile, max(1, -(-B // max(1, min_grid_steps))))
    Bt = min(_round_up(Bt, 8), _round_up(B, 8))
    padded_B = _round_up(B, Bt)
    num_b = padded_B // Bt

    # Pad only the tiny int32 id array (never the [B,S,E] activation stream).
    ids = text.astype(jnp.int32)
    if padded_B != B:
        ids = jnp.pad(ids, ((0, padded_B - B), (0, 0)))

    if fuse_embedding_gather:
        # Fold the embedding table through the packed conv weights once.
        Vp = _round_up(V, 8)
        tw = jnp.dot(emb_table, w_pack, precision=lax.Precision.HIGHEST)
        tw = jnp.pad(tw, ((0, Vp - V), (0, 0))).astype(compute_dtype)   # [Vp, C_all]
        x = ids[..., None]                                              # [pB, S, 1] int32
        x_spec = pl.BlockSpec((Bt, S, 1), lambda b: (b, 0, 0))
        w_operand, w_spec = tw, pl.BlockSpec((Vp, C_all), lambda b: (0, 0))
    else:
        # bf16 by default: halves the dominant HBM stream on every generation.
        x = jnp.take(emb_table.astype(compute_dtype), ids, axis=0)      # [pB, S, E]
        x_spec = pl.BlockSpec((Bt, S, E), lambda b: (b, 0, 0))
        w_operand = w_pack.astype(compute_dtype)
        w_spec = pl.BlockSpec((E, C_all), lambda b: (0, 0))

    kernel = _make_kernel(tuple(filter_sizes), F, fuse_embedding_gather)

    out = pl.pallas_call(
        kernel,
        out_shape=jax.ShapeDtypeStruct((padded_B, out_pad), jnp.float32),
        grid_spec=pltpu.PrefetchScalarGridSpec(
            num_scalar_prefetch=0,
            grid=(num_b,),
            in_specs=[
                x_spec,
                w_spec,
                pl.BlockSpec((1, total_F), lambda b: (0, 0)),
                pl.BlockSpec((total_F, out_pad), lambda b: (0, 0)),
                pl.BlockSpec((1, out_pad), lambda b: (0, 0)),
            ],
            out_specs=pl.BlockSpec((Bt, out_pad), lambda b: (b, 0)),
        ),
        compiler_params=pltpu.CompilerParams(
            dimension_semantics=("parallel",)),
    )(x, w_operand, conv_bias, head_w, head_b)
    return out[:B, :out_w]


# ---------------------------- pure-JAX reference ---------------------------

def reference_forward(text, params, *, filter_sizes):
    emb = jnp.take(params["embedding"], text, axis=0)               # [B, S, E]
    B, S, E = emb.shape
    pooled = []
    for k, fs in enumerate(filter_sizes):
        T = S - fs + 1
        w = params["conv_w"][k]                                     # [fs, E, F]
        b = params["conv_b"][k]                                     # [1, F]
        acc = jnp.zeros((B, T, w.shape[2]), jnp.float32)
        for i in range(fs):
            acc = acc + jnp.einsum("bte,ef->btf", emb[:, i:i + T, :], w[i])
        acc = jnp.maximum(acc + b[None, :, :], 0.0)
        pooled.append(jnp.max(acc, axis=1))                         # [B, F]
    cat = jnp.concatenate(pooled, axis=1)
    out = cat @ params["fc_w"] + params["fc_b"]
    out_rej = cat @ params["fc_rej_w"] + params["fc_rej_b"]
    logits = jnp.concatenate([out, out_rej], axis=1)
    return jax.nn.softmax(logits, axis=1)


# --------------------------------- main ------------------------------------

if __name__ == "__main__":
    VOCAB = 50
    EMBED = 32
    N_FILTERS = 8
    FILTER_SIZES = (2, 3, 4)
    OUTPUT_DIM = 3
    PAD_IDX = 0
    B, S = 2, 16

    key = jax.random.PRNGKey(0)
    keys = jax.random.split(key, 16)

    emb_table = 0.1 * jax.random.normal(keys[0], (VOCAB, EMBED), jnp.float32)
    emb_table = emb_table.at[PAD_IDX].set(0.0)                      # padding_idx row = 0

    conv_w, conv_b = [], []
    for k, fs in enumerate(FILTER_SIZES):
        # PyTorch conv weight [F, 1, fs, E] -> kernel layout [fs, E, F]
        w = 0.1 * jax.random.normal(keys[1 + k], (fs, EMBED, N_FILTERS), jnp.float32)
        b = 0.1 * jax.random.normal(keys[4 + k], (1, N_FILTERS), jnp.float32)
        conv_w.append(w)
        conv_b.append(b)

    total_F = len(FILTER_SIZES) * N_FILTERS
    params = {
        "embedding": emb_table,
        "conv_w": conv_w,
        "conv_b": conv_b,
        # PyTorch Linear weight [out, in] stored transposed as [in, out]
        "fc_w": 0.1 * jax.random.normal(keys[8], (total_F, OUTPUT_DIM), jnp.float32),
        "fc_b": 0.1 * jax.random.normal(keys[9], (1, OUTPUT_DIM), jnp.float32),
        "fc_rej_w": 0.1 * jax.random.normal(keys[10], (total_F, 1), jnp.float32),
        "fc_rej_b": 0.1 * jax.random.normal(keys[11], (1, 1), jnp.float32),
    }

    text = jax.random.randint(keys[12], (B, S), 0, VOCAB, dtype=jnp.int32)
    ref = reference_forward(text, params, filter_sizes=FILTER_SIZES)

    # 1) fused in-kernel embedding lookup (small vocab), f32 MXU operands.
    out_f32 = cnn_rej_forward(text, params, filter_sizes=FILTER_SIZES,
                              compute_dtype=jnp.float32)
    out_f32 = jax.block_until_ready(out_f32)
    assert out_f32.shape == (B, OUTPUT_DIM + 1)
    assert jnp.allclose(out_f32, ref, atol=5e-3, rtol=5e-3), (out_f32, ref)
    assert jnp.allclose(jnp.sum(out_f32, axis=1), 1.0, atol=5e-3)

    # 2) default path: fused lookup + bf16 MXU operands (f32 accumulation).
    out_bf16 = cnn_rej_forward(text, params, filter_sizes=FILTER_SIZES)
    out_bf16 = jax.block_until_ready(out_bf16)
    assert jnp.allclose(out_bf16, ref, atol=5e-2, rtol=5e-2), (out_bf16, ref)

    # 3) large-vocab style pre-gathered path + multi-step batch tiling
    #    (ragged batch, padded ids only, grid of 3 "parallel" steps).
    B2 = 19
    text2 = jax.random.randint(keys[13], (B2, S), 0, VOCAB, dtype=jnp.int32)
    ref2 = reference_forward(text2, params, filter_sizes=FILTER_SIZES)
    out2 = cnn_rej_forward(text2, params, filter_sizes=FILTER_SIZES,
                           fuse_embedding_gather=False, max_batch_tile=8)
    out2 = jax.block_until_ready(out2)
    assert out2.shape == (B2, OUTPUT_DIM + 1)
    assert jnp.allclose(out2, ref2, atol=5e-2, rtol=5e-2), (out2, ref2)

    print("KERNEL_OK")
</pallas_src>

<mosaic_0001>
module attributes {stable_mosaic.version = 11 : i64} {
  func.func @kernel(%arg0: i32, %arg1: memref<8x16x1xi32, #tpu.memory_space<vmem>>, %arg2: memref<56x96xf32, #tpu.memory_space<vmem>>, %arg3: memref<1x24xf32, #tpu.memory_space<vmem>>, %arg4: memref<24x128xf32, #tpu.memory_space<vmem>>, %arg5: memref<1x128xf32, #tpu.memory_space<vmem>>, %arg6: memref<8x128xf32, #tpu.memory_space<vmem>>) attributes {dimension_semantics = [#tpu.dimension_semantics<parallel>], iteration_bounds = array<i64: 1>, scalar_prefetch = 0 : i64, scratch_operands = 0 : i64, tpu.core_type = #tpu.core_type<tc>, window_params = [{transform_indices = @transform_0, window_bounds = array<i64: 8, 16, 1>}, {pipeline_mode = #tpu.pipeline_mode<synchronous>, transform_indices = @transform_1, window_bounds = array<i64: 56, 96>}, {pipeline_mode = #tpu.pipeline_mode<synchronous>, transform_indices = @transform_2, window_bounds = array<i64: 1, 24>}, {pipeline_mode = #tpu.pipeline_mode<synchronous>, transform_indices = @transform_3, window_bounds = array<i64: 24, 128>}, {pipeline_mode = #tpu.pipeline_mode<synchronous>, transform_indices = @transform_4, window_bounds = array<i64: 1, 128>}, {transform_indices = @transform_5, window_bounds = array<i64: 8, 128>}]} {
    %c0 = arith.constant 0 : index
    %c0_0 = arith.constant 0 : index
    %c0_1 = arith.constant 0 : index
    %0 = vector.load %arg1[%c0, %c0_0, %c0_1] : memref<8x16x1xi32, #tpu.memory_space<vmem>>, vector<8x16x1xi32>
    %1 = tpu.iota {dimensions = array<i32: 2>} : vector<8x16x56xi32>
    %2 = vector.broadcast %0 : vector<8x16x1xi32> to vector<8x16x56xi32>
    %3 = arith.cmpi eq, %2, %1 : vector<8x16x56xi32>
    %4 = arith.extui %3 : vector<8x16x56xi1> to vector<8x16x56xi32>
    %5 = arith.sitofp %4 : vector<8x16x56xi32> to vector<8x16x56xf32>
    %6 = vector.shape_cast %5 : vector<8x16x56xf32> to vector<128x56xf32>
    %c0_2 = arith.constant 0 : index
    %c0_3 = arith.constant 0 : index
    %7 = vector.load %arg2[%c0_2, %c0_3] : memref<56x96xf32, #tpu.memory_space<vmem>>, vector<56x96xf32>
    %cst = arith.constant dense<0.000000e+00> : vector<128x96xf32>
    %8 = tpu.matmul %6, %7, %cst {dimension_numbers = #tpu.dot_dimension_numbers<[1], [0], [0], [1], [0, 0, 1, 1], [], []>} : vector<128x56xf32>, vector<56x96xf32>, vector<128x96xf32> -> vector<128x96xf32>
    %9 = vector.shape_cast %8 : vector<128x96xf32> to vector<8x16x96xf32>
    %10 = vector.extract_strided_slice %9 {offsets = [0, 0, 0], sizes = [8, 13, 24], strides = [1, 1, 1]} : vector<8x16x96xf32> to vector<8x13x24xf32>
    %11 = vector.extract_strided_slice %9 {offsets = [0, 1, 24], sizes = [8, 13, 24], strides = [1, 1, 1]} : vector<8x16x96xf32> to vector<8x13x24xf32>
    %12 = arith.addf %10, %11 : vector<8x13x24xf32>
    %13 = vector.extract_strided_slice %9 {offsets = [0, 2, 48], sizes = [8, 13, 24], strides = [1, 1, 1]} : vector<8x16x96xf32> to vector<8x13x24xf32>
    %14 = arith.addf %12, %13 : vector<8x13x24xf32>
    %15 = vector.extract_strided_slice %9 {offsets = [0, 3, 72], sizes = [8, 13, 24], strides = [1, 1, 1]} : vector<8x16x96xf32> to vector<8x13x24xf32>
    %16 = arith.addf %14, %15 : vector<8x13x24xf32>
    %cst_4 = arith.constant dense<0xFF800000> : vector<8x24xf32>
    %17 = vector.multi_reduction <maximumf>, %16, %cst_4 [1] : vector<8x13x24xf32> to vector<8x24xf32>
    %18 = tpu.iota {dimensions = array<i32: 1>} : vector<1x24xi32>
    %c0_i32 = arith.constant 0 : i32
    %19 = vector.broadcast %c0_i32 : i32 to vector<1x24xi32>
    %c0_i32_5 = arith.constant 0 : i32
    %20 = vector.broadcast %c0_i32_5 : i32 to vector<1x24xi32>
    %21 = arith.cmpi sge, %18, %20 : vector<1x24xi32>
    %c8_i32 = arith.constant 8 : i32
    %22 = vector.broadcast %c8_i32 : i32 to vector<1x24xi32>
    %23 = arith.cmpi slt, %18, %22 : vector<1x24xi32>
    %24 = arith.andi %21, %23 : vector<1x24xi1>
    %c2_i32 = arith.constant 2 : i32
    %25 = vector.broadcast %c2_i32 : i32 to vector<1x24xi32>
    %26 = arith.select %24, %25, %19 : vector<1x24xi1>, vector<1x24xi32>
    %c8_i32_6 = arith.constant 8 : i32
    %27 = vector.broadcast %c8_i32_6 : i32 to vector<1x24xi32>
    %28 = arith.cmpi sge, %18, %27 : vector<1x24xi32>
    %c16_i32 = arith.constant 16 : i32
    %29 = vector.broadcast %c16_i32 : i32 to vector<1x24xi32>
    %30 = arith.cmpi slt, %18, %29 : vector<1x24xi32>
    %31 = arith.andi %28, %30 : vector<1x24xi1>
    %c3_i32 = arith.constant 3 : i32
    %32 = vector.broadcast %c3_i32 : i32 to vector<1x24xi32>
    %33 = arith.select %31, %32, %26 : vector<1x24xi1>, vector<1x24xi32>
    %c16_i32_7 = arith.constant 16 : i32
    %34 = vector.broadcast %c16_i32_7 : i32 to vector<1x24xi32>
    %35 = arith.cmpi sge, %18, %34 : vector<1x24xi32>
    %c24_i32 = arith.constant 24 : i32
    %36 = vector.broadcast %c24_i32 : i32 to vector<1x24xi32>
    %37 = arith.cmpi slt, %18, %36 : vector<1x24xi32>
    %38 = arith.andi %35, %37 : vector<1x24xi1>
    %c4_i32 = arith.constant 4 : i32
    %39 = vector.broadcast %c4_i32 : i32 to vector<1x24xi32>
    %40 = arith.select %38, %39, %33 : vector<1x24xi1>, vector<1x24xi32>
    %41 = vector.extract_strided_slice %9 {offsets = [0, 13, 0], sizes = [8, 1, 24], strides = [1, 1, 1]} : vector<8x16x96xf32> to vector<8x1x24xf32>
    %42 = vector.shape_cast %41 : vector<8x1x24xf32> to vector<8x24xf32>
    %43 = vector.extract_strided_slice %9 {offsets = [0, 14, 24], sizes = [8, 1, 24], strides = [1, 1, 1]} : vector<8x16x96xf32> to vector<8x1x24xf32>
    %44 = vector.shape_cast %43 : vector<8x1x24xf32> to vector<8x24xf32>
    %45 = arith.addf %42, %44 : vector<8x24xf32>
    %46 = vector.extract_strided_slice %9 {offsets = [0, 15, 48], sizes = [8, 1, 24], strides = [1, 1, 1]} : vector<8x16x96xf32> to vector<8x1x24xf32>
    %47 = vector.shape_cast %46 : vector<8x1x24xf32> to vector<8x24xf32>
    %48 = arith.addf %45, %47 : vector<8x24xf32>
    %c3_i32_8 = arith.constant 3 : i32
    %49 = vector.broadcast %c3_i32_8 : i32 to vector<1x24xi32>
    %50 = arith.cmpi sle, %40, %49 : vector<1x24xi32>
    %cst_9 = arith.constant -1.000000e+30 : f32
    %51 = vector.shape_cast %50 : vector<1x24xi1> to vector<1x24xi1>
    %52 = vector.broadcast %51 : vector<1x24xi1> to vector<8x24xi1>
    %53 = vector.broadcast %cst_9 : f32 to vector<8x24xf32>
    %54 = arith.select %52, %48, %53 : vector<8x24xi1>, vector<8x24xf32>
    %55 = arith.maximumf %17, %54 : vector<8x24xf32>
    %56 = vector.extract_strided_slice %9 {offsets = [0, 14, 0], sizes = [8, 1, 24], strides = [1, 1, 1]} : vector<8x16x96xf32> to vector<8x1x24xf32>
    %57 = vector.shape_cast %56 : vector<8x1x24xf32> to vector<8x24xf32>
    %58 = vector.extract_strided_slice %9 {offsets = [0, 15, 24], sizes = [8, 1, 24], strides = [1, 1, 1]} : vector<8x16x96xf32> to vector<8x1x24xf32>
    %59 = vector.shape_cast %58 : vector<8x1x24xf32> to vector<8x24xf32>
    %60 = arith.addf %57, %59 : vector<8x24xf32>
    %c2_i32_10 = arith.constant 2 : i32
    %61 = vector.broadcast %c2_i32_10 : i32 to vector<1x24xi32>
    %62 = arith.cmpi sle, %40, %61 : vector<1x24xi32>
    %cst_11 = arith.constant -1.000000e+30 : f32
    %63 = vector.shape_cast %62 : vector<1x24xi1> to vector<1x24xi1>
    %64 = vector.broadcast %63 : vector<1x24xi1> to vector<8x24xi1>
    %65 = vector.broadcast %cst_11 : f32 to vector<8x24xf32>
    %66 = arith.select %64, %60, %65 : vector<8x24xi1>, vector<8x24xf32>
    %67 = arith.maximumf %55, %66 : vector<8x24xf32>
    %c0_12 = arith.constant 0 : index
    %c0_13 = arith.constant 0 : index
    %68 = vector.load %arg3[%c0_12, %c0_13] : memref<1x24xf32, #tpu.memory_space<vmem>>, vector<1x24xf32>
    %69 = vector.broadcast %68 : vector<1x24xf32> to vector<8x24xf32>
    %70 = arith.addf %67, %69 : vector<8x24xf32>
    %cst_14 = arith.constant 0.000000e+00 : f32
    %71 = vector.broadcast %cst_14 : f32 to vector<8x24xf32>
    %72 = arith.maximumf %70, %71 : vector<8x24xf32>
    %c0_15 = arith.constant 0 : index
    %c0_16 = arith.constant 0 : index
    %73 = vector.load %arg4[%c0_15, %c0_16] : memref<24x128xf32, #tpu.memory_space<vmem>>, vector<24x128xf32>
    %cst_17 = arith.constant dense<0.000000e+00> : vector<8x128xf32>
    %74 = tpu.matmul %72, %73, %cst_17 {dimension_numbers = #tpu.dot_dimension_numbers<[1], [0], [0], [1], [0, 0, 1, 1], [], []>} : vector<8x24xf32>, vector<24x128xf32>, vector<8x128xf32> -> vector<8x128xf32>
    %c0_18 = arith.constant 0 : index
    %c0_19 = arith.constant 0 : index
    %75 = vector.load %arg5[%c0_18, %c0_19] : memref<1x128xf32, #tpu.memory_space<vmem>>, vector<1x128xf32>
    %76 = vector.broadcast %75 : vector<1x128xf32> to vector<8x128xf32>
    %77 = arith.addf %74, %76 : vector<8x128xf32>
    %cst_20 = arith.constant dense<0xFF800000> : vector<8xf32>
    %78 = vector.multi_reduction <maximumf>, %77, %cst_20 [1] : vector<8x128xf32> to vector<8xf32>
    %79 = vector.shape_cast %78 : vector<8xf32> to vector<8x1xf32>
    %80 = vector.broadcast %79 : vector<8x1xf32> to vector<8x128xf32>
    %81 = arith.subf %77, %80 : vector<8x128xf32>
    %82 = math.exp %81 : vector<8x128xf32>
    %cst_21 = arith.constant dense<0.000000e+00> : vector<8xf32>
    %83 = vector.multi_reduction <add>, %82, %cst_21 [1] : vector<8x128xf32> to vector<8xf32>
    %84 = vector.shape_cast %83 : vector<8xf32> to vector<8x1xf32>
    %85 = tpu.reciprocal %84 {approx = true} : vector<8x1xf32> -> vector<8x1xf32>
    %86 = vector.broadcast %85 : vector<8x1xf32> to vector<8x128xf32>
    %87 = arith.mulf %82, %86 : vector<8x128xf32>
    %c0_22 = arith.constant 0 : index
    %c0_23 = arith.constant 0 : index
    %88 = vector.load %arg6[%c0_22, %c0_23] : memref<8x128xf32, #tpu.memory_space<vmem>>, vector<8x128xf32>
    tpu.vector_store %arg6[%c0_22, %c0_23], %87 {strides = array<i32>} : memref<8x128xf32, #tpu.memory_space<vmem>>, vector<8x128xf32>,
    return
  }
  func.func @transform_0(%arg0: i32) -> (i32, i32, i32) {
    %c0_i32 = arith.constant 0 : i32
    %c0_i32_0 = arith.constant 0 : i32
    %c0_i32_1 = arith.constant 0 : i32
    return %arg0, %c0_i32, %c0_i32_0 : i32, i32, i32
  }
  func.func @transform_1(%arg0: i32) -> (i32, i32) {
    %c0_i32 = arith.constant 0 : i32
    %c0_i32_0 = arith.constant 0 : i32
    %c0_i32_1 = arith.constant 0 : i32
    return %c0_i32, %c0_i32_0 : i32, i32
  }
  func.func @transform_2(%arg0: i32) -> (i32, i32) {
    %c0_i32 = arith.constant 0 : i32
    %c0_i32_0 = arith.constant 0 : i32
    %c0_i32_1 = arith.constant 0 : i32
    return %c0_i32, %c0_i32_0 : i32, i32
  }
  func.func @transform_3(%arg0: i32) -> (i32, i32) {
    %c0_i32 = arith.constant 0 : i32
    %c0_i32_0 = arith.constant 0 : i32
    %c0_i32_1 = arith.constant 0 : i32
    return %c0_i32, %c0_i32_0 : i32, i32
  }
  func.func @transform_4(%arg0: i32) -> (i32, i32) {
    %c0_i32 = arith.constant 0 : i32
    %c0_i32_0 = arith.constant 0 : i32
    %c0_i32_1 = arith.constant 0 : i32
    return %c0_i32, %c0_i32_0 : i32, i32
  }
  func.func @transform_5(%arg0: i32) -> (i32, i32) {
    %c0_i32 = arith.constant 0 : i32
    %c0_i32_0 = arith.constant 0 : i32
    return %arg0, %c0_i32 : i32, i32
  }
}

</mosaic_0001>

<llo_original>
// kernel: tpu_custom_call.1
$region0: #{tpu_custom_call.1}
  #allocation0 [shape = 'u32[]', space=smem, size = 0x4, offset = 0x4, fixed_abs, tag = 'smem constant byte address 0x4 - core index']
  #allocation1 [shape = 'u32[144,128]{1,0:T(1,128)}', space=vmem, size = 0x12000, scoped, tag = 'internal scratch']
  %s0 = inlined_call_operand.vmem [shape: s32[8,16,1], index: 0, kind: input, shape index: {}]
  %s1 = inlined_call_operand.vmem [shape: f32[56,96], index: 1, kind: input, shape index: {}]
  %s2 = inlined_call_operand.vmem [shape: f32[1,24], index: 2, kind: input, shape index: {}]
  %s3 = inlined_call_operand.vmem [shape: f32[24,128], index: 3, kind: input, shape index: {}]
  %s4 = inlined_call_operand.vmem [shape: f32[1,128], index: 4, kind: input, shape index: {}]
  %s5 = inlined_call_operand.hbm [shape: f32[8,128], index: 5, kind: output, shape index: {}]
  %s6 = sld [smem:[#allocation0]]
  $region30: #{tpu_custom_call.1} parent=0
    _
  %s8 = ssub.s32 1, %s6
  %s9 = scalar_select 0, %s8, %s6
  $region1: #{tpu_custom_call.1} parent=0
    #allocation2 [shape = 'u8[4096]{0}', space=vmem, size = 0x1000, scoped, tag = 'output window, operand 0, single buffered']
    #allocation3 [shape = 's32[1]{0}', space=sflag, size = 0x4, scoped, tag = 'scoped memory for tpu_custom_call.1']
    %10 = vsyncpa [#allocation3], 0
    // Predicated region
    $region2: #{tpu_custom_call.1} parent=1 // pred_check
      _
    $region3: #{tpu_custom_call.1} parent=1 // pred_check_branch
      %12 = sbr.rel (0) target = $region5
    $region4: #{tpu_custom_call.1} parent=1 // pred_region
      _
    $region5: #{tpu_custom_call.1} parent=1 // pred_fallthru
      _
    // Predicated region
    $region6: #{tpu_custom_call.1} parent=1 // pred_check
      _
    $region7: #{tpu_custom_call.1} parent=1 // pred_check_branch
      %14 = sbr.rel (0) target = $region9
    $region8: #{tpu_custom_call.1} parent=1 // pred_region
      _
    $region9: #{tpu_custom_call.1} parent=1 // pred_fallthru
      _
    // Predicated region
    $region10: #{tpu_custom_call.1} parent=1 // pred_check
      _
    $region11: #{tpu_custom_call.1} parent=1 // pred_check_branch
      %16 = sbr.rel (0) target = $region13
    $region12: #{tpu_custom_call.1} parent=1 // pred_region
      _
    $region13: #{tpu_custom_call.1} parent=1 // pred_fallthru
      _
    // Predicated region
    $region14: #{tpu_custom_call.1} parent=1 // pred_check
      _
    $region15: #{tpu_custom_call.1} parent=1 // pred_check_branch
      %18 = sbr.rel (0) target = $region17
    $region16: #{tpu_custom_call.1} parent=1 // pred_region
      _
    $region17: #{tpu_custom_call.1} parent=1 // pred_fallthru
      _
    // Predicated region
    $region18: #{tpu_custom_call.1} parent=1 // pred_check
      _
    $region19: #{tpu_custom_call.1} parent=1 // pred_check_branch
      %20 = sbr.rel (0) target = $region21
    $region20: #{tpu_custom_call.1} parent=1 // pred_region
      _
    $region21: #{tpu_custom_call.1} parent=1 // pred_fallthru
      _
    %v21 = vld [vmem:[%s0] sm:$0xff]
    %v22 = vld [vmem:[%s0 + $0x8] sm:$0xff]
    %v23 = vld [vmem:[%s0 + $0x10] sm:$0xff]
    %v24 = vld [vmem:[%s0 + $0x18] sm:$0xff]
    %v25 = vld [vmem:[%s0 + $0x20] sm:$0xff]
    %v26 = vld [vmem:[%s0 + $0x28] sm:$0xff]
    %v27 = vld [vmem:[%s0 + $0x30] sm:$0xff]
    %v28 = vld [vmem:[%s0 + $0x38] sm:$0xff]
    %v29 = vld [vmem:[%s0 + $0x40] sm:$0xff]
    %v30 = vld [vmem:[%s0 + $0x48] sm:$0xff]
    %v31 = vld [vmem:[%s0 + $0x50] sm:$0xff]
    %v32 = vld [vmem:[%s0 + $0x58] sm:$0xff]
    %v33 = vld [vmem:[%s0 + $0x60] sm:$0xff]
    %v34 = vld [vmem:[%s0 + $0x68] sm:$0xff]
    %v35 = vld [vmem:[%s0 + $0x70] sm:$0xff]
    %v36 = vld [vmem:[%s0 + $0x78] sm:$0xff]
    %v37 = vlaneseq
    %v38 = vand.u32 %v37, 127
    %39 = vset.pattern.permute.xlu0 0
    %40 = vperm.xlu0 %39, %v21
    %v41 = vpop.permute.xlu0 %40
    %42 = vset.pattern.permute.xlu0 0
    %43 = vperm.xlu0 %42, %v22
    %v44 = vpop.permute.xlu0 %43
    %45 = vset.pattern.permute.xlu0 0
    %46 = vperm.xlu0 %45, %v23
    %v47 = vpop.permute.xlu0 %46
    %48 = vset.pattern.permute.xlu0 0
    %49 = vperm.xlu0 %48, %v24
    %v50 = vpop.permute.xlu0 %49
    %51 = vset.pattern.permute.xlu0 0
    %52 = vperm.xlu0 %51, %v25
    %v53 = vpop.permute.xlu0 %52
    %54 = vset.pattern.permute.xlu0 0
    %55 = vperm.xlu0 %54, %v26
    %v56 = vpop.permute.xlu0 %55
    %57 = vset.pattern.permute.xlu0 0
    %58 = vperm.xlu0 %57, %v27
    %v59 = vpop.permute.xlu0 %58
    %60 = vset.pattern.permute.xlu0 0
    %61 = vperm.xlu0 %60, %v28
    %v62 = vpop.permute.xlu0 %61
    %63 = vset.pattern.permute.xlu0 0
    %64 = vperm.xlu0 %63, %v29
    %v65 = vpop.permute.xlu0 %64
    %66 = vset.pattern.permute.xlu0 0
    %67 = vperm.xlu0 %66, %v30
    %v68 = vpop.permute.xlu0 %67
    %69 = vset.pattern.permute.xlu0 0
    %70 = vperm.xlu0 %69, %v31
    %v71 = vpop.permute.xlu0 %70
    %72 = vset.pattern.permute.xlu0 0
    %73 = vperm.xlu0 %72, %v32
    %v74 = vpop.permute.xlu0 %73
    %75 = vset.pattern.permute.xlu0 0
    %76 = vperm.xlu0 %75, %v33
    %v77 = vpop.permute.xlu0 %76
    %78 = vset.pattern.permute.xlu0 0
    %79 = vperm.xlu0 %78, %v34
    %v80 = vpop.permute.xlu0 %79
    %81 = vset.pattern.permute.xlu0 0
    %82 = vperm.xlu0 %81, %v35
    %v83 = vpop.permute.xlu0 %82
    %84 = vset.pattern.permute.xlu0 0
    %85 = vperm.xlu0 %84, %v36
    %v86 = vpop.permute.xlu0 %85
    %vm87 = vcmp.eq.s32.totalorder %v41, %v38
    %vm88 = vcmp.eq.s32.totalorder %v44, %v38
    %vm89 = vcmp.eq.s32.totalorder %v47, %v38
    %vm90 = vcmp.eq.s32.totalorder %v50, %v38
    %vm91 = vcmp.eq.s32.totalorder %v53, %v38
    %vm92 = vcmp.eq.s32.totalorder %v56, %v38
    %vm93 = vcmp.eq.s32.totalorder %v59, %v38
    %vm94 = vcmp.eq.s32.totalorder %v62, %v38
    %vm95 = vcmp.eq.s32.totalorder %v65, %v38
    %vm96 = vcmp.eq.s32.totalorder %v68, %v38
    %vm97 = vcmp.eq.s32.totalorder %v71, %v38
    %vm98 = vcmp.eq.s32.totalorder %v74, %v38
    %vm99 = vcmp.eq.s32.totalorder %v77, %v38
    %vm100 = vcmp.eq.s32.totalorder %v80, %v38
    %vm101 = vcmp.eq.s32.totalorder %v83, %v38
    %vm102 = vcmp.eq.s32.totalorder %v86, %v38
    %v103 = vsel %vm87, 1, 0
    %v104 = vsel %vm88, 1, 0
    %v105 = vsel %vm89, 1, 0
    %v106 = vsel %vm90, 1, 0
    %v107 = vsel %vm91, 1, 0
    %v108 = vsel %vm92, 1, 0
    %v109 = vsel %vm93, 1, 0
    %v110 = vsel %vm94, 1, 0
    %v111 = vsel %vm95, 1, 0
    %v112 = vsel %vm96, 1, 0
    %v113 = vsel %vm97, 1, 0
    %v114 = vsel %vm98, 1, 0
    %v115 = vsel %vm99, 1, 0
    %v116 = vsel %vm100, 1, 0
    %v117 = vsel %vm101, 1, 0
    %v118 = vsel %vm102, 1, 0
    %v119 = vcvt.s32.f32 %v103
    %v120 = vcvt.s32.f32 %v104
    %v121 = vcvt.s32.f32 %v105
    %v122 = vcvt.s32.f32 %v106
    %v123 = vcvt.s32.f32 %v107
    %v124 = vcvt.s32.f32 %v108
    %v125 = vcvt.s32.f32 %v109
    %v126 = vcvt.s32.f32 %v110
    %v127 = vcvt.s32.f32 %v111
    %v128 = vcvt.s32.f32 %v112
    %v129 = vcvt.s32.f32 %v113
    %v130 = vcvt.s32.f32 %v114
    %v131 = vcvt.s32.f32 %v115
    %v132 = vcvt.s32.f32 %v116
    %v133 = vcvt.s32.f32 %v117
    %v134 = vcvt.s32.f32 %v118
    %v135 = vld [vmem:[%s1] sm:$0xff]
    %v136 = vld [vmem:[%s1 + $0x8] sm:$0xff]
    %v137 = vld [vmem:[%s1 + $0x10] sm:$0xff]
    %v138 = vld [vmem:[%s1 + $0x18] sm:$0xff]
    %v139 = vld [vmem:[%s1 + $0x20] sm:$0xff]
    %v140 = vld [vmem:[%s1 + $0x28] sm:$0xff]
    %v141 = vld [vmem:[%s1 + $0x30] sm:$0xff]
    %vm142 = vcmask 457728
    %v144 = vsel %vm142, %v119, 0
    %v147 = vsel %vm142, %v120, 0
    %v150 = vsel %vm142, %v121, 0
    %v153 = vsel %vm142, %v122, 0
    %v156 = vsel %vm142, %v123, 0
    %v159 = vsel %vm142, %v124, 0
    %v162 = vsel %vm142, %v125, 0
    %v165 = vsel %vm142, %v126, 0
    %v168 = vsel %vm142, %v127, 0
    %v171 = vsel %vm142, %v128, 0
    %v174 = vsel %vm142, %v129, 0
    %v177 = vsel %vm142, %v130, 0
    %v180 = vsel %vm142, %v131, 0
    %v183 = vsel %vm142, %v132, 0
    %v186 = vsel %vm142, %v133, 0
    %v189 = vsel %vm142, %v134, 0
    %191 = vmatprep.subr.mxu0 0.0
    %192 = vmatpush1.msra.mxu0 %v135
    %193 = vmatprep.subr.mxu0 0.0
    %194 = vmatpush1.msra.mxu0 %v136
    %195 = vmatprep.subr.mxu0 0.0
    %196 = vmatpush1.msra.mxu0 %v137
    %197 = vmatprep.subr.mxu0 0.0
    %198 = vmatpush1.msra.mxu0 %v138
    %199 = vmatprep.subr.mxu0 0.0
    %200 = vmatpush1.msra.mxu0 %v139
    %201 = vmatprep.subr.mxu0 0.0
    %202 = vmatpush1.msra.mxu0 %v140
    %203 = vmatprep.subr.mxu0 0.0
    %204 = vmatpush1.msra.mxu0 %v141
    %205 = vmatprep.subr.mxu0 0.0
    %206 = vmatpush1.msra.mxu0 0.0
    %207 = vmatprep.subr.mxu0 0.0
    %208 = vmatpush1.msra.mxu0 0.0
    %209 = vmatprep.subr.mxu0 0.0
    %210 = vmatpush1.msra.mxu0 0.0
    %211 = vmatprep.subr.mxu0 0.0
    %212 = vmatpush1.msra.mxu0 0.0
    %213 = vmatprep.subr.mxu0 0.0
    %214 = vmatpush1.msra.mxu0 0.0
    %215 = vmatprep.subr.mxu0 0.0
    %216 = vmatpush1.msra.mxu0 0.0
    %217 = vmatprep.subr.mxu0 0.0
    %218 = vmatpush1.msra.mxu0 0.0
    %219 = vmatprep.subr.mxu0 0.0
    %220 = vmatpush1.msra.mxu0 0.0
    %221 = vmatprep.subr.mxu0 0.0
    %222 = vmatpush1.msra.mxu0 0.0
    %223 = vmatprep.subr.mxu0 0.0
    %224 = vmatpush1.msra.mxu0 0.0
    %225 = vmatprep.subr.mxu0 0.0
    %226 = vmatpush1.msra.mxu0 0.0
    %227 = vmatprep.subr.mxu0 0.0
    %228 = vmatpush1.msra.mxu0 0.0
    %229 = vmatprep.subr.mxu0 0.0
    %230 = vmatpush1.msra.mxu0 0.0
    %231 = vmatprep.subr.mxu0 0.0
    %232 = vmatpush1.msra.mxu0 0.0
    %233 = vmatprep.subr.mxu0 0.0
    %234 = vmatpush1.msra.mxu0 0.0
    %235 = vmatprep.subr.mxu0 0.0
    %236 = vmatpush1.msra.mxu0 0.0
    %237 = vmatprep.subr.mxu0 0.0
    %238 = vmatpush1.msra.mxu0 0.0
    %239 = vmatprep.subr.mxu0 0.0
    %240 = vmatpush1.msra.mxu0 0.0
    %241 = vmatprep.subr.mxu0 0.0
    %242 = vmatpush1.msra.mxu0 0.0
    %243 = vmatprep.subr.mxu0 0.0
    %244 = vmatpush1.msra.mxu0 0.0
    %245 = vmatprep.subr.mxu0 0.0
    %246 = vmatpush1.msra.mxu0 0.0
    %247 = vmatprep.subr.mxu0 0.0
    %248 = vmatpush1.msra.mxu0 0.0
    %249 = vmatprep.subr.mxu0 0.0
    %250 = vmatpush1.msra.mxu0 0.0
    %251 = vmatprep.subr.mxu0 0.0
    %252 = vmatpush1.msra.mxu0 0.0
    %253 = vmatprep.subr.mxu0 0.0
    %254 = vmatpush1.msra.mxu0 0.0
    %255 = vmatprep.mubr.f32.mxu0 0.0
    %256 = vmatmul.mubr.f32.gmra.mrb[0].mxu0 %v144
    %v257 = vpop.f32.mrb[0].mxu0
    %v258 = vadd.f32 0.0, %v257
    %v259 = vpop.f32.mrb[0].mxu0
    %260 = vmatprep.mubr.f32.mxu0 0.0
    %261 = vmatmul.mubr.f32.gmra.mrb[0].mxu0 %v147
    %v262 = vpop.f32.mrb[0].mxu0
    %v263 = vadd.f32 0.0, %v262
    %v264 = vpop.f32.mrb[0].mxu0
    %265 = vmatprep.mubr.f32.mxu0 0.0
    %266 = vmatmul.mubr.f32.gmra.mrb[0].mxu0 %v150
    %v267 = vpop.f32.mrb[0].mxu0
    %v268 = vadd.f32 0.0, %v267
    %v269 = vpop.f32.mrb[0].mxu0
    %270 = vmatprep.mubr.f32.mxu0 0.0
    %271 = vmatmul.mubr.f32.gmra.mrb[0].mxu0 %v153
    %v272 = vpop.f32.mrb[0].mxu0
    %v273 = vadd.f32 0.0, %v272
    %v274 = vpop.f32.mrb[0].mxu0
    %275 = vmatprep.mubr.f32.mxu0 0.0
    %276 = vmatmul.mubr.f32.gmra.mrb[0].mxu0 %v156
    %v277 = vpop.f32.mrb[0].mxu0
    %v278 = vadd.f32 0.0, %v277
    %v279 = vpop.f32.mrb[0].mxu0
    %280 = vmatprep.mubr.f32.mxu0 0.0
    %281 = vmatmul.mubr.f32.gmra.mrb[0].mxu0 %v159
    %v282 = vpop.f32.mrb[0].mxu0
    %v283 = vadd.f32 0.0, %v282
    %v284 = vpop.f32.mrb[0].mxu0
    %285 = vmatprep.mubr.f32.mxu0 0.0
    %286 = vmatmul.mubr.f32.gmra.mrb[0].mxu0 %v162
    %v287 = vpop.f32.mrb[0].mxu0
    %v288 = vadd.f32 0.0, %v287
    %v289 = vpop.f32.mrb[0].mxu0
    %290 = vmatprep.mubr.f32.mxu0 0.0
    %291 = vmatmul.mubr.f32.gmra.mrb[0].mxu0 %v165
    %v292 = vpop.f32.mrb[0].mxu0
    %v293 = vadd.f32 0.0, %v292
    %v294 = vpop.f32.mrb[0].mxu0
    %295 = vmatprep.mubr.f32.mxu0 0.0
    %296 = vmatmul.mubr.f32.gmra.mrb[0].mxu0 %v168
    %v297 = vpop.f32.mrb[0].mxu0
    %v298 = vadd.f32 0.0, %v297
    %v299 = vpop.f32.mrb[0].mxu0
    %300 = vmatprep.mubr.f32.mxu0 0.0
    %301 = vmatmul.mubr.f32.gmra.mrb[0].mxu0 %v171
    %v302 = vpop.f32.mrb[0].mxu0
    %v303 = vadd.f32 0.0, %v302
    %v304 = vpop.f32.mrb[0].mxu0
    %305 = vmatprep.mubr.f32.mxu0 0.0
    %306 = vmatmul.mubr.f32.gmra.mrb[0].mxu0 %v174
    %v307 = vpop.f32.mrb[0].mxu0
    %v308 = vadd.f32 0.0, %v307
    %v309 = vpop.f32.mrb[0].mxu0
    %310 = vmatprep.mubr.f32.mxu0 0.0
    %311 = vmatmul.mubr.f32.gmra.mrb[0].mxu0 %v177
    %v312 = vpop.f32.mrb[0].mxu0
    %v313 = vadd.f32 0.0, %v312
    %v314 = vpop.f32.mrb[0].mxu0
    %315 = vmatprep.mubr.f32.mxu0 0.0
    %316 = vmatmul.mubr.f32.gmra.mrb[0].mxu0 %v180
    %v317 = vpop.f32.mrb[0].mxu0
    %v318 = vadd.f32 0.0, %v317
    %v319 = vpop.f32.mrb[0].mxu0
    %320 = vmatprep.mubr.f32.mxu0 0.0
    %321 = vmatmul.mubr.f32.gmra.mrb[0].mxu0 %v183
    %v322 = vpop.f32.mrb[0].mxu0
    %v323 = vadd.f32 0.0, %v322
    %v324 = vpop.f32.mrb[0].mxu0
    %325 = vmatprep.mubr.f32.mxu0 0.0
    %326 = vmatmul.mubr.f32.gmra.mrb[0].mxu0 %v186
    %v327 = vpop.f32.mrb[0].mxu0
    %v328 = vadd.f32 0.0, %v327
    %v329 = vpop.f32.mrb[0].mxu0
    %330 = vmatprep.mubr.f32.mxu0 0.0
    %331 = vmatmul.mubr.f32.gmra.mrb[0].mxu0 %v189
    %v332 = vpop.f32.mrb[0].mxu0
    %v333 = vadd.f32 0.0, %v332
    %v334 = vpop.f32.mrb[0].mxu0
    %335 = vdwg.mxu0
    %vm352 = vcmask 1046528
    %v353 = vrot.slane %v258, 1
    %v354 = vrot.slane %v263, 1
    %v355 = vsel %vm352, %v353, %v354
    %v356 = vrot.slane %v268, 1
    %v357 = vrot.slane %v273, 1
    %v358 = vsel %vm352, %v356, %v357
    %v359 = vrot.slane %v278, 1
    %v360 = vrot.slane %v283, 1
    %v361 = vsel %vm352, %v359, %v360
    %v362 = vrot.slane %v288, 1
    %v363 = vrot.slane %v293, 1
    %v364 = vsel %vm352, %v362, %v363
    %v365 = vrot.slane %v298, 1
    %v366 = vrot.slane %v303, 1
    %v367 = vsel %vm352, %v365, %v366
    %v368 = vrot.slane %v308, 1
    %v369 = vrot.slane %v313, 1
    %v370 = vsel %vm352, %v368, %v369
    %v371 = vrot.slane %v318, 1
    %v372 = vrot.slane %v323, 1
    %v373 = vsel %vm352, %v371, %v372
    %v374 = vrot.slane %v328, 1
    %v375 = vrot.slane %v333, 1
    %v376 = vsel %vm352, %v374, %v375
    %377 = vrot.lane.b32.xlu0 %v355, 104
    %v378 = vpop.permute.xlu0 %377
    %379 = vrot.lane.b32.xlu0 %v354, 104
    %v380 = vpop.permute.xlu0 %379
    %381 = vrot.lane.b32.xlu0 %v358, 104
    %v382 = vpop.permute.xlu0 %381
    %383 = vrot.lane.b32.xlu0 %v357, 104
    %v384 = vpop.permute.xlu0 %383
    %385 = vrot.lane.b32.xlu0 %v361, 104
    %v386 = vpop.permute.xlu0 %385
    %387 = vrot.lane.b32.xlu0 %v360, 104
    %v388 = vpop.permute.xlu0 %387
    %389 = vrot.lane.b32.xlu0 %v364, 104
    %v390 = vpop.permute.xlu0 %389
    %391 = vrot.lane.b32.xlu0 %v363, 104
    %v392 = vpop.permute.xlu0 %391
    %393 = vrot.lane.b32.xlu0 %v367, 104
    %v394 = vpop.permute.xlu0 %393
    %395 = vrot.lane.b32.xlu0 %v366, 104
    %v396 = vpop.permute.xlu0 %395
    %397 = vrot.lane.b32.xlu0 %v370, 104
    %v398 = vpop.permute.xlu0 %397
    %399 = vrot.lane.b32.xlu0 %v369, 104
    %v400 = vpop.permute.xlu0 %399
    %401 = vrot.lane.b32.xlu0 %v373, 104
    %v402 = vpop.permute.xlu0 %401
    %403 = vrot.lane.b32.xlu0 %v372, 104
    %v404 = vpop.permute.xlu0 %403
    %405 = vrot.lane.b32.xlu0 %v376, 104
    %v406 = vpop.permute.xlu0 %405
    %407 = vrot.lane.b32.xlu0 %v375, 104
    %v408 = vpop.permute.xlu0 %407
    %v425 = vadd.f32 %v258, %v378
    %v426 = vadd.f32 %v263, %v380
    %v427 = vadd.f32 %v268, %v382
    %v428 = vadd.f32 %v273, %v384
    %v429 = vadd.f32 %v278, %v386
    %v430 = vadd.f32 %v283, %v388
    %v431 = vadd.f32 %v288, %v390
    %v432 = vadd.f32 %v293, %v392
    %v433 = vadd.f32 %v298, %v394
    %v434 = vadd.f32 %v303, %v396
    %v435 = vadd.f32 %v308, %v398
    %v436 = vadd.f32 %v313, %v400
    %v437 = vadd.f32 %v318, %v402
    %v438 = vadd.f32 %v323, %v404
    %v439 = vadd.f32 %v328, %v406
    %v440 = vadd.f32 %v333, %v408
    %vm441 = vcmask 1045504
    %v442 = vrot.slane %v258, 2
    %v443 = vrot.slane %v263, 2
    %v444 = vsel %vm441, %v442, %v443
    %v445 = vrot.slane %v268, 2
    %v446 = vrot.slane %v273, 2
    %v447 = vsel %vm441, %v445, %v446
    %v448 = vrot.slane %v278, 2
    %v449 = vrot.slane %v283, 2
    %v450 = vsel %vm441, %v448, %v449
    %v451 = vrot.slane %v288, 2
    %v452 = vrot.slane %v293, 2
    %v453 = vsel %vm441, %v451, %v452
    %v454 = vrot.slane %v298, 2
    %v455 = vrot.slane %v303, 2
    %v456 = vsel %vm441, %v454, %v455
    %v457 = vrot.slane %v308, 2
    %v458 = vrot.slane %v313, 2
    %v459 = vsel %vm441, %v457, %v458
    %v460 = vrot.slane %v318, 2
    %v461 = vrot.slane %v323, 2
    %v462 = vsel %vm441, %v460, %v461
    %v463 = vrot.slane %v328, 2
    %v464 = vrot.slane %v333, 2
    %v465 = vsel %vm441, %v463, %v464
    %466 = vrot.lane.b32.xlu0 %v444, 80
    %v467 = vpop.permute.xlu0 %466
    %468 = vrot.lane.b32.xlu0 %v443, 80
    %v469 = vpop.permute.xlu0 %468
    %470 = vrot.lane.b32.xlu0 %v447, 80
    %v471 = vpop.permute.xlu0 %470
    %472 = vrot.lane.b32.xlu0 %v446, 80
    %v473 = vpop.permute.xlu0 %472
    %474 = vrot.lane.b32.xlu0 %v450, 80
    %v475 = vpop.permute.xlu0 %474
    %476 = vrot.lane.b32.xlu0 %v449, 80
    %v477 = vpop.permute.xlu0 %476
    %478 = vrot.lane.b32.xlu0 %v453, 80
    %v479 = vpop.permute.xlu0 %478
    %480 = vrot.lane.b32.xlu0 %v452, 80
    %v481 = vpop.permute.xlu0 %480
    %482 = vrot.lane.b32.xlu0 %v456, 80
    %v483 = vpop.permute.xlu0 %482
    %484 = vrot.lane.b32.xlu0 %v455, 80
    %v485 = vpop.permute.xlu0 %484
    %486 = vrot.lane.b32.xlu0 %v459, 80
    %v487 = vpop.permute.xlu0 %486
    %488 = vrot.lane.b32.xlu0 %v458, 80
    %v489 = vpop.permute.xlu0 %488
    %490 = vrot.lane.b32.xlu0 %v462, 80
    %v491 = vpop.permute.xlu0 %490
    %492 = vrot.lane.b32.xlu0 %v461, 80
    %v493 = vpop.permute.xlu0 %492
    %494 = vrot.lane.b32.xlu0 %v465, 80
    %v495 = vpop.permute.xlu0 %494
    %496 = vrot.lane.b32.xlu0 %v464, 80
    %v497 = vpop.permute.xlu0 %496
    %v514 = vadd.f32 %v425, %v467
    %v515 = vadd.f32 %v426, %v469
    %v516 = vadd.f32 %v427, %v471
    %v517 = vadd.f32 %v428, %v473
    %v518 = vadd.f32 %v429, %v475
    %v519 = vadd.f32 %v430, %v477
    %v520 = vadd.f32 %v431, %v479
    %v521 = vadd.f32 %v432, %v481
    %v522 = vadd.f32 %v433, %v483
    %v523 = vadd.f32 %v434, %v485
    %v524 = vadd.f32 %v435, %v487
    %v525 = vadd.f32 %v436, %v489
    %v526 = vadd.f32 %v437, %v491
    %v527 = vadd.f32 %v438, %v493
    %v528 = vadd.f32 %v439, %v495
    %v529 = vadd.f32 %v440, %v497
    %vm530 = vcmask 1044480
    %v531 = vrot.slane %v258, 3
    %v532 = vrot.slane %v263, 3
    %v533 = vsel %vm530, %v531, %v532
    %v534 = vrot.slane %v268, 3
    %v535 = vrot.slane %v273, 3
    %v536 = vsel %vm530, %v534, %v535
    %v537 = vrot.slane %v278, 3
    %v538 = vrot.slane %v283, 3
    %v539 = vsel %vm530, %v537, %v538
    %v540 = vrot.slane %v288, 3
    %v541 = vrot.slane %v293, 3
    %v542 = vsel %vm530, %v540, %v541
    %v543 = vrot.slane %v298, 3
    %v544 = vrot.slane %v303, 3
    %v545 = vsel %vm530, %v543, %v544
    %v546 = vrot.slane %v308, 3
    %v547 = vrot.slane %v313, 3
    %v548 = vsel %vm530, %v546, %v547
    %v549 = vrot.slane %v318, 3
    %v550 = vrot.slane %v323, 3
    %v551 = vsel %vm530, %v549, %v550
    %v552 = vrot.slane %v328, 3
    %v553 = vrot.slane %v333, 3
    %v554 = vsel %vm530, %v552, %v553
    %555 = vrot.lane.b32.xlu0 %v533, 56
    %v556 = vpop.permute.xlu0 %555
    %557 = vrot.lane.b32.xlu0 %v532, 56
    %v558 = vpop.permute.xlu0 %557
    %559 = vrot.lane.b32.xlu0 %v536, 56
    %v560 = vpop.permute.xlu0 %559
    %561 = vrot.lane.b32.xlu0 %v535, 56
    %v562 = vpop.permute.xlu0 %561
    %563 = vrot.lane.b32.xlu0 %v539, 56
    %v564 = vpop.permute.xlu0 %563
    %565 = vrot.lane.b32.xlu0 %v538, 56
    %v566 = vpop.permute.xlu0 %565
    %567 = vrot.lane.b32.xlu0 %v542, 56
    %v568 = vpop.permute.xlu0 %567
    %569 = vrot.lane.b32.xlu0 %v541, 56
    %v570 = vpop.permute.xlu0 %569
    %571 = vrot.lane.b32.xlu0 %v545, 56
    %v572 = vpop.permute.xlu0 %571
    %573 = vrot.lane.b32.xlu0 %v544, 56
    %v574 = vpop.permute.xlu0 %573
    %575 = vrot.lane.b32.xlu0 %v548, 56
    %v576 = vpop.permute.xlu0 %575
    %577 = vrot.lane.b32.xlu0 %v547, 56
    %v578 = vpop.permute.xlu0 %577
    %579 = vrot.lane.b32.xlu0 %v551, 56
    %v580 = vpop.permute.xlu0 %579
    %581 = vrot.lane.b32.xlu0 %v550, 56
    %v582 = vpop.permute.xlu0 %581
    %583 = vrot.lane.b32.xlu0 %v554, 56
    %v584 = vpop.permute.xlu0 %583
    %585 = vrot.lane.b32.xlu0 %v553, 56
    %v586 = vpop.permute.xlu0 %585
    %v603 = vadd.f32 %v514, %v556
    %v604 = vadd.f32 %v515, %v558
    %v605 = vadd.f32 %v516, %v560
    %v606 = vadd.f32 %v517, %v562
    %v607 = vadd.f32 %v518, %v564
    %v608 = vadd.f32 %v519, %v566
    %v609 = vadd.f32 %v520, %v568
    %v610 = vadd.f32 %v521, %v570
    %v611 = vadd.f32 %v522, %v572
    %v612 = vadd.f32 %v523, %v574
    %v613 = vadd.f32 %v524, %v576
    %v614 = vadd.f32 %v525, %v578
    %v615 = vadd.f32 %v526, %v580
    %v616 = vadd.f32 %v527, %v582
    %v617 = vadd.f32 %v528, %v584
    %v618 = vadd.f32 %v529, %v586
    %vm619 = vcmask 195584
    %v620 = vsel %vm619, %v603, -inf
    %vm621 = vcmask 192512
    %v622 = vsel %vm621, %v604, -inf
    %v623 = vmax.f32 %v620, %v622
    %v624 = vrot.slane %v623, 4
    %v625 = vmax.f32 %v623, %v624
    %v626 = vrot.slane %v625, 2
    %v627 = vmax.f32 %v625, %v626
    %v628 = vrot.slane %v627, 1
    %v629 = vmax.f32 %v627, %v628
    %v630 = vsel %vm619, %v605, -inf
    %v631 = vsel %vm621, %v606, -inf
    %v632 = vmax.f32 %v630, %v631
    %v633 = vrot.slane %v632, 4
    %v634 = vmax.f32 %v632, %v633
    %v635 = vrot.slane %v634, 2
    %v636 = vmax.f32 %v634, %v635
    %v637 = vrot.slane %v636, 1
    %v638 = vmax.f32 %v636, %v637
    %v639 = vsel %vm619, %v607, -inf
    %v640 = vsel %vm621, %v608, -inf
    %v641 = vmax.f32 %v639, %v640
    %v642 = vrot.slane %v641, 4
    %v643 = vmax.f32 %v641, %v642
    %v644 = vrot.slane %v643, 2
    %v645 = vmax.f32 %v643, %v644
    %v646 = vrot.slane %v645, 1
    %v647 = vmax.f32 %v645, %v646
    %v648 = vsel %vm619, %v609, -inf
    %v649 = vsel %vm621, %v610, -inf
    %v650 = vmax.f32 %v648, %v649
    %v651 = vrot.slane %v650, 4
    %v652 = vmax.f32 %v650, %v651
    %v653 = vrot.slane %v652, 2
    %v654 = vmax.f32 %v652, %v653
    %v655 = vrot.slane %v654, 1
    %v656 = vmax.f32 %v654, %v655
    %v657 = vsel %vm619, %v611, -inf
    %v658 = vsel %vm621, %v612, -inf
    %v659 = vmax.f32 %v657, %v658
    %v660 = vrot.slane %v659, 4
    %v661 = vmax.f32 %v659, %v660
    %v662 = vrot.slane %v661, 2
    %v663 = vmax.f32 %v661, %v662
    %v664 = vrot.slane %v663, 1
    %v665 = vmax.f32 %v663, %v664
    %v666 = vsel %vm619, %v613, -inf
    %v667 = vsel %vm621, %v614, -inf
    %v668 = vmax.f32 %v666, %v667
    %v669 = vrot.slane %v668, 4
    %v670 = vmax.f32 %v668, %v669
    %v671 = vrot.slane %v670, 2
    %v672 = vmax.f32 %v670, %v671
    %v673 = vrot.slane %v672, 1
    %v674 = vmax.f32 %v672, %v673
    %v675 = vsel %vm619, %v615, -inf
    %v676 = vsel %vm621, %v616, -inf
    %v677 = vmax.f32 %v675, %v676
    %v678 = vrot.slane %v677, 4
    %v679 = vmax.f32 %v677, %v678
    %v680 = vrot.slane %v679, 2
    %v681 = vmax.f32 %v679, %v680
    %v682 = vrot.slane %v681, 1
    %v683 = vmax.f32 %v681, %v682
    %v684 = vsel %vm619, %v617, -inf
    %v685 = vsel %vm621, %v618, -inf
    %v686 = vmax.f32 %v684, %v685
    %v687 = vrot.slane %v686, 4
    %v688 = vmax.f32 %v686, %v687
    %v689 = vrot.slane %v688, 2
    %v690 = vmax.f32 %v688, %v689
    %v691 = vrot.slane %v690, 1
    %v692 = vmax.f32 %v690, %v691
    %vm693 = vcmp.ge.s32.totalorder %v38, 0
    %vm694 = vcmp.lt.s32.totalorder %v38, 8
    %vm695 = vmand %vm693, %vm694
    %v696 = vsel %vm695, 2, 0
    %vm697 = vcmp.ge.s32.totalorder %v38, 8
    %vm698 = vcmp.lt.s32.totalorder %v38, 16
    %vm699 = vmand %vm697, %vm698
    %v700 = vsel %vm699, 3, %v696
    %vm701 = vcmp.ge.s32.totalorder %v38, 16
    %vm702 = vcmp.lt.s32.totalorder %v38, 24
    %vm703 = vmand %vm701, %vm702
    %v704 = vsel %vm703, 4, %v700
    %vm705 = vcmp.le.s32.totalorder %v704, 3
    %v706 = vsel %vm705, 1, 0
    %vm707 = vcmp.eq.s32.totalorder %v706, 1
    %v716 = vrot.slane %v515, 5
    %v717 = vrot.slane %v517, 4
    %vm718 = vcmask 1041409
    %v719 = vsel %vm718, %v717, %v716
    %v720 = vrot.slane %v519, 3
    %vm721 = vcmask 1042434
    %v722 = vsel %vm721, %v720, %v719
    %v723 = vrot.slane %v521, 2
    %vm724 = vcmask 1043459
    %v725 = vsel %vm724, %v723, %v722
    %v726 = vrot.slane %v523, 1
    %vm727 = vcmask 1044484
    %v728 = vsel %vm727, %v726, %v725
    %vm729 = vcmask 1045509
    %v730 = vsel %vm729, %v525, %v728
    %v731 = vrot.slane %v527, 7
    %vm732 = vcmask 1046534
    %v733 = vsel %vm732, %v731, %v730
    %v734 = vrot.slane %v529, 6
    %vm735 = vcmask 1047559
    %v736 = vsel %vm735, %v734, %v733
    %v738 = vsel %vm707, %v736, -1e+30
    %v740 = vrot.slane %v738, 1
    %v741 = vrot.slane %v738, 2
    %v742 = vrot.slane %v738, 3
    %v743 = vrot.slane %v738, 4
    %v744 = vrot.slane %v738, 5
    %v745 = vrot.slane %v738, 6
    %v746 = vrot.slane %v738, 7
    %v755 = vmax.f32 %v629, %v738
    %v756 = vmax.f32 %v638, %v740
    %v757 = vmax.f32 %v647, %v741
    %v758 = vmax.f32 %v656, %v742
    %v759 = vmax.f32 %v665, %v743
    %v760 = vmax.f32 %v674, %v744
    %v761 = vmax.f32 %v683, %v745
    %v762 = vmax.f32 %v692, %v746
    %vm763 = vcmp.le.s32.totalorder %v704, 2
    %v764 = vsel %vm763, 1, 0
    %vm765 = vcmp.eq.s32.totalorder %v764, 1
    %v774 = vrot.slane %v426, 6
    %v775 = vrot.slane %v428, 5
    %v776 = vsel %vm718, %v775, %v774
    %v777 = vrot.slane %v430, 4
    %v778 = vsel %vm721, %v777, %v776
    %v779 = vrot.slane %v432, 3
    %v780 = vsel %vm724, %v779, %v778
    %v781 = vrot.slane %v434, 2
    %v782 = vsel %vm727, %v781, %v780
    %v783 = vrot.slane %v436, 1
    %v784 = vsel %vm729, %v783, %v782
    %v785 = vsel %vm732, %v438, %v784
    %v786 = vrot.slane %v440, 7
    %v787 = vsel %vm735, %v786, %v785
    %v789 = vsel %vm765, %v787, -1e+30
    %v791 = vrot.slane %v789, 1
    %v792 = vrot.slane %v789, 2
    %v793 = vrot.slane %v789, 3
    %v794 = vrot.slane %v789, 4
    %v795 = vrot.slane %v789, 5
    %v796 = vrot.slane %v789, 6
    %v797 = vrot.slane %v789, 7
    %v806 = vmax.f32 %v755, %v789
    %v807 = vmax.f32 %v756, %v791
    %v808 = vmax.f32 %v757, %v792
    %v809 = vmax.f32 %v758, %v793
    %v810 = vmax.f32 %v759, %v794
    %v811 = vmax.f32 %v760, %v795
    %v812 = vmax.f32 %v761, %v796
    %v813 = vmax.f32 %v762, %v797
    %v814 = vld [vmem:[%s2] sm:$0x1]
    %v816 = vlaneseq
    %v817 = vshrl.u32 %v816, 7
    %v818 = vsub.s32 0, %v817
    %v819 = vrot.slane %v814, %v818
    %v821 = vadd.f32 %v806, %v819
    %v822 = vadd.f32 %v807, %v819
    %v823 = vadd.f32 %v808, %v819
    %v824 = vadd.f32 %v809, %v819
    %v825 = vadd.f32 %v810, %v819
    %v826 = vadd.f32 %v811, %v819
    %v827 = vadd.f32 %v812, %v819
    %v828 = vadd.f32 %v813, %v819
    %v829 = vmax.f32 %v821, 0.0
    %v830 = vmax.f32 %v822, 0.0
    %v831 = vmax.f32 %v823, 0.0
    %v832 = vmax.f32 %v824, 0.0
    %v833 = vmax.f32 %v825, 0.0
    %v834 = vmax.f32 %v826, 0.0
    %v835 = vmax.f32 %v827, 0.0
    %v836 = vmax.f32 %v828, 0.0
    %v837 = vld [vmem:[%s3] sm:$0xff]
    %v838 = vld [vmem:[%s3 + $0x8] sm:$0xff]
    %v839 = vld [vmem:[%s3 + $0x10] sm:$0xff]
    %v840 = vld [vmem:[%s4] sm:$0x1]
    %v842 = vlaneseq
    %v843 = vshrl.u32 %v842, 7
    %v844 = vsub.s32 0, %v843
    %v845 = vrot.slane %v840, %v844
    %v855 = vrot.slane %v830, 7
    %v856 = vsel %vm718, %v855, %v829
    %v857 = vrot.slane %v831, 6
    %v858 = vsel %vm721, %v857, %v856
    %v859 = vrot.slane %v832, 5
    %v860 = vsel %vm724, %v859, %v858
    %v861 = vrot.slane %v833, 4
    %v862 = vsel %vm727, %v861, %v860
    %v863 = vrot.slane %v834, 3
    %v864 = vsel %vm729, %v863, %v862
    %v865 = vrot.slane %v835, 2
    %v866 = vsel %vm732, %v865, %v864
    %v867 = vrot.slane %v836, 1
    %v868 = vsel %vm735, %v867, %v866
    %v869 = vsel %vm619, %v868, 0
    %871 = vmatprep.subr.mxu0 0.0
    %872 = vmatpush1.msra.mxu0 %v837
    %873 = vmatprep.subr.mxu0 0.0
    %874 = vmatpush1.msra.mxu0 %v838
    %875 = vmatprep.subr.mxu0 0.0
    %876 = vmatpush1.msra.mxu0 %v839
    %877 = vmatprep.subr.mxu0 0.0
    %878 = vmatpush1.msra.mxu0 0.0
    %879 = vmatprep.subr.mxu0 0.0
    %880 = vmatpush1.msra.mxu0 0.0
    %881 = vmatprep.subr.mxu0 0.0
    %882 = vmatpush1.msra.mxu0 0.0
    %883 = vmatprep.subr.mxu0 0.0
    %884 = vmatpush1.msra.mxu0 0.0
    %885 = vmatprep.subr.mxu0 0.0
    %886 = vmatpush1.msra.mxu0 0.0
    %887 = vmatprep.subr.mxu0 0.0
    %888 = vmatpush1.msra.mxu0 0.0
    %889 = vmatprep.subr.mxu0 0.0
    %890 = vmatpush1.msra.mxu0 0.0
    %891 = vmatprep.subr.mxu0 0.0
    %892 = vmatpush1.msra.mxu0 0.0
    %893 = vmatprep.subr.mxu0 0.0
    %894 = vmatpush1.msra.mxu0 0.0
    %895 = vmatprep.subr.mxu0 0.0
    %896 = vmatpush1.msra.mxu0 0.0
    %897 = vmatprep.subr.mxu0 0.0
    %898 = vmatpush1.msra.mxu0 0.0
    %899 = vmatprep.subr.mxu0 0.0
    %900 = vmatpush1.msra.mxu0 0.0
    %901 = vmatprep.subr.mxu0 0.0
    %902 = vmatpush1.msra.mxu0 0.0
    %903 = vmatprep.subr.mxu0 0.0
    %904 = vmatpush1.msra.mxu0 0.0
    %905 = vmatprep.subr.mxu0 0.0
    %906 = vmatpush1.msra.mxu0 0.0
    %907 = vmatprep.subr.mxu0 0.0
    %908 = vmatpush1.msra.mxu0 0.0
    %909 = vmatprep.subr.mxu0 0.0
    %910 = vmatpush1.msra.mxu0 0.0
    %911 = vmatprep.subr.mxu0 0.0
    %912 = vmatpush1.msra.mxu0 0.0
    %913 = vmatprep.subr.mxu0 0.0
    %914 = vmatpush1.msra.mxu0 0.0
    %915 = vmatprep.subr.mxu0 0.0
    %916 = vmatpush1.msra.mxu0 0.0
    %917 = vmatprep.subr.mxu0 0.0
    %918 = vmatpush1.msra.mxu0 0.0
    %919 = vmatprep.subr.mxu0 0.0
    %920 = vmatpush1.msra.mxu0 0.0
    %921 = vmatprep.subr.mxu0 0.0
    %922 = vmatpush1.msra.mxu0 0.0
    %923 = vmatprep.subr.mxu0 0.0
    %924 = vmatpush1.msra.mxu0 0.0
    %925 = vmatprep.subr.mxu0 0.0
    %926 = vmatpush1.msra.mxu0 0.0
    %927 = vmatprep.subr.mxu0 0.0
    %928 = vmatpush1.msra.mxu0 0.0
    %929 = vmatprep.subr.mxu0 0.0
    %930 = vmatpush1.msra.mxu0 0.0
    %931 = vmatprep.subr.mxu0 0.0
    %932 = vmatpush1.msra.mxu0 0.0
    %933 = vmatprep.subr.mxu0 0.0
    %934 = vmatpush1.msra.mxu0 0.0
    %935 = vmatprep.mubr.f32.mxu0 0.0
    %936 = vmatmul.mubr.f32.gmra.mrb[0].mxu0 %v869
    %v937 = vpop.f32.mrb[0].mxu0
    %v938 = vadd.f32 %v845, %v937
    %v939 = vpop.f32.mrb[0].mxu0
    %940 = vdwg.mxu0
    %941 = vmax.xlane.f32.xlu0 %v938
    %v942 = vpop.xlane.xlu0 %941
    %v943 = vsub.f32 %v938, %v942
    %v944 = vmul.f32 %v943, 1.442695
    %v945 = vpow.pop %v944
    %946 = vadd.xlane.f32.xlu0 %v945
    %v947 = vpop.xlane.xlu0 %946
    %v948 = vrcp.pop %v947
    %v949 = vmul.f32 %v945, %v948
    %950 = vst [vmem:[#allocation2] sm:$0xff] %v949
    // Predicated region
    $region22: #{tpu_custom_call.1} parent=1 // pred_check
      _
    $region23: #{tpu_custom_call.1} parent=1 // pred_check_branch
      %952 = sbr.rel (0) target = $region25
    $region24: #{tpu_custom_call.1} parent=1 // pred_region
      %s954 = ssub.s32 128, 128
      %955 = vsyncadd [#allocation3], %s954
      %s957 = sshll.u32 [#allocation2], 4
      %s958 = int_to_ptr.vmem [resolvable:$true] %s957
      %960 = dma.vmem_to_hbm [thread:$0]  %s958, 128, %s5, [#allocation3]
    $region25: #{tpu_custom_call.1} parent=1 // pred_fallthru
      _
    // Predicated region
    $region26: #{tpu_custom_call.1} parent=1 // pred_check
      _
    $region27: #{tpu_custom_call.1} parent=1 // pred_check_branch
      %962 = sbr.rel (0) target = $region29
    $region28: #{tpu_custom_call.1} parent=1 // pred_region
      %963 = dma.done [#allocation3], 128
    $region29: #{tpu_custom_call.1} parent=1 // pred_fallthru
      _
    %964 = vsyncpa [#allocation3], 1

</llo_original>
